<compile_context>
chip_gen: v7x
topology: tpu7x:2x2x1
jax: 0.10.0
libtpu: 0.0.40
codegen_flags: <defaults>
</compile_context>

<pallas_src>
import functools

import jax
import jax.numpy as jnp
from jax.experimental import pallas as pl
from jax.experimental.pallas import tpu as pltpu


def _entropy_kernel(x_ref, o_ref, *, hw, hw_tile, need_mask):
    """x_ref: (C, hw_tile) slice of one image (channels on sublanes, pixels on lanes).
    o_ref: (8, 128) f32 tile whose total sum equals this block's entropy sum."""
    x = x_ref[...].astype(jnp.float32)                  # (C, hw_tile)

    # Numerically-stable entropy over the channel (sublane) axis:
    #   ent = log(sum_c e^{x-m}) - sum_c (x-m) e^{x-m} / sum_c e^{x-m}
    m = jnp.max(x, axis=0, keepdims=True)               # (1, hw_tile)
    xm = x - m
    e = jnp.exp(xm)                                      # (C, hw_tile)
    s = jnp.sum(e, axis=0, keepdims=True)                # (1, hw_tile)
    t = jnp.sum(e * xm, axis=0, keepdims=True)           # (1, hw_tile)
    ent = jnp.log(s) - t / s                             # (1, hw_tile) per-pixel entropy

    if need_mask:  # only pay for masking when H*W is not a multiple of hw_tile
        j = pl.program_id(1)
        col = jax.lax.broadcasted_iota(jnp.int32, (1, hw_tile), 1) + j * hw_tile
        ent = jnp.where(col < hw, ent, 0.0)

    partial = jnp.sum(ent)                               # one reduce per (large) block
    r = jax.lax.broadcasted_iota(jnp.int32, (8, 128), 0)
    c = jax.lax.broadcasted_iota(jnp.int32, (8, 128), 1)
    o_ref[...] = jnp.where((r == 0) & (c == 0), partial, 0.0)


def entropy_minimization(x, reduction="mean", target_block_bytes=4 * 1024 * 1024):
    """x: (N, C, H, W) array. Returns scalar entropy loss ('mean'/'sum' over N*H*W)."""
    if reduction not in ("mean", "sum"):
        # TODO(synk): reduction='none' (per-pixel entropy map output) path not implemented.
        raise NotImplementedError("only 'mean' and 'sum' reductions are implemented")

    N, C, H, W = x.shape
    HW = H * W
    xr = x.reshape(N, C, HW)                             # free view, no HBM pass
    itemsize = jnp.dtype(x.dtype).itemsize

    # Choose the pixel-tile: full H*W if it fits the byte target, else a
    # multiple of 128 lanes (legal block shape even if it does not divide H*W).
    if HW * C * itemsize <= target_block_bytes:
        hw_tile = HW
    else:
        hw_tile = max(128, (target_block_bytes // (C * itemsize)) // 128 * 128)
        if hw_tile >= HW:
            hw_tile = HW
    num_hw = -(-HW // hw_tile)
    need_mask = (HW % hw_tile) != 0

    kernel = functools.partial(
        _entropy_kernel, hw=HW, hw_tile=hw_tile, need_mask=need_mask
    )

    partials = pl.pallas_call(
        kernel,
        out_shape=jax.ShapeDtypeStruct((N * num_hw, 8, 128), jnp.float32),
        grid=(N, num_hw),
        in_specs=[pl.BlockSpec((None, C, hw_tile), lambda n, j: (n, 0, j))],
        out_specs=pl.BlockSpec((None, 8, 128), lambda n, j: (n * num_hw + j, 0, 0)),
        compiler_params=pltpu.CompilerParams(
            dimension_semantics=("parallel", "parallel"),
            vmem_limit_bytes=32 * 1024 * 1024,
        ),
    )(xr)

    total = jnp.sum(partials)                            # tiny XLA reduce over partials
    if reduction == "mean":
        return total / jnp.float32(N * HW)
    return total


def _reference(x, reduction="mean"):
    x = x.astype(jnp.float32)
    p = jax.nn.softmax(x, axis=1)
    logp = jax.nn.log_softmax(x, axis=1)
    loss = -jnp.sum(p * logp, axis=1)
    return jnp.mean(loss) if reduction == "mean" else jnp.sum(loss)


if __name__ == "__main__":
    key = jax.random.PRNGKey(0)
    x = jax.random.normal(key, (2, 4, 16, 16), dtype=jnp.float32)  # NCHW

    loss_mean = jax.block_until_ready(entropy_minimization(x, reduction="mean"))
    ref_mean = _reference(x, reduction="mean")
    assert jnp.allclose(loss_mean, ref_mean, atol=1e-5, rtol=1e-5), (loss_mean, ref_mean)

    loss_sum = jax.block_until_ready(entropy_minimization(x, reduction="sum"))
    ref_sum = _reference(x, reduction="sum")
    assert jnp.allclose(loss_sum, ref_sum, atol=1e-4, rtol=1e-5), (loss_sum, ref_sum)

    print("KERNEL_OK")
</pallas_src>

<mosaic_0001>
module attributes {stable_mosaic.version = 11 : i64} {
  func.func @_entropy_kernel(%arg0: i32, %arg1: i32, %arg2: memref<1x4x256xf32, #tpu.memory_space<vmem>>, %arg3: memref<1x8x128xf32, #tpu.memory_space<vmem>>) attributes {dimension_semantics = [#tpu.dimension_semantics<parallel>, #tpu.dimension_semantics<parallel>], iteration_bounds = array<i64: 2, 1>, scalar_prefetch = 0 : i64, scratch_operands = 0 : i64, tpu.core_type = #tpu.core_type<tc>, window_params = [{transform_indices = @transform_0, window_bounds = array<i64: 1, 4, 256>}, {transform_indices = @transform_1, window_bounds = array<i64: 1, 8, 128>}]} {
    %c0 = arith.constant 0 : index
    %c0_0 = arith.constant 0 : index
    %c0_1 = arith.constant 0 : index
    %0 = vector.load %arg2[%c0, %c0_0, %c0_1] : memref<1x4x256xf32, #tpu.memory_space<vmem>>, vector<1x4x256xf32>
    %1 = vector.shape_cast %0 : vector<1x4x256xf32> to vector<4x256xf32>
    %cst = arith.constant dense<0xFF800000> : vector<256xf32>
    %2 = vector.multi_reduction <maximumf>, %1, %cst [0] : vector<4x256xf32> to vector<256xf32>
    %3 = vector.shape_cast %2 : vector<256xf32> to vector<1x256xf32>
    %4 = vector.broadcast %3 : vector<1x256xf32> to vector<4x256xf32>
    %5 = arith.subf %1, %4 : vector<4x256xf32>
    %6 = math.exp %5 : vector<4x256xf32>
    %cst_2 = arith.constant dense<0.000000e+00> : vector<256xf32>
    %7 = vector.multi_reduction <add>, %6, %cst_2 [0] : vector<4x256xf32> to vector<256xf32>
    %8 = vector.shape_cast %7 : vector<256xf32> to vector<1x256xf32>
    %9 = arith.mulf %6, %5 : vector<4x256xf32>
    %cst_3 = arith.constant dense<0.000000e+00> : vector<256xf32>
    %10 = vector.multi_reduction <add>, %9, %cst_3 [0] : vector<4x256xf32> to vector<256xf32>
    %11 = vector.shape_cast %10 : vector<256xf32> to vector<1x256xf32>
    %12 = math.log %8 : vector<1x256xf32>
    %13 = arith.divf %11, %8 : vector<1x256xf32>
    %14 = arith.subf %12, %13 : vector<1x256xf32>
    %15 = vector.shape_cast %14 : vector<1x256xf32> to vector<1x1x256xf32>
    %cst_4 = arith.constant dense<0.000000e+00> : vector<1xf32>
    %16 = vector.multi_reduction <add>, %15, %cst_4 [1, 2] : vector<1x1x256xf32> to vector<1xf32>
    %17 = vector.shape_cast %16 : vector<1xf32> to vector<1x1x1xf32>
    %18 = vector.extract %17[0, 0, 0] : f32 from vector<1x1x1xf32>
    %19 = tpu.iota {dimensions = array<i32: 0>} : vector<8x128xi32>
    %20 = tpu.iota {dimensions = array<i32: 1>} : vector<8x128xi32>
    %c0_i32 = arith.constant 0 : i32
    %21 = vector.broadcast %c0_i32 : i32 to vector<8x128xi32>
    %22 = arith.cmpi eq, %19, %21 : vector<8x128xi32>
    %c0_i32_5 = arith.constant 0 : i32
    %23 = vector.broadcast %c0_i32_5 : i32 to vector<8x128xi32>
    %24 = arith.cmpi eq, %20, %23 : vector<8x128xi32>
    %25 = arith.andi %22, %24 : vector<8x128xi1>
    %cst_6 = arith.constant 0.000000e+00 : f32
    %26 = vector.broadcast %18 : f32 to vector<8x128xf32>
    %27 = vector.broadcast %cst_6 : f32 to vector<8x128xf32>
    %28 = arith.select %25, %26, %27 : vector<8x128xi1>, vector<8x128xf32>
    %c0_7 = arith.constant 0 : index
    %c0_8 = arith.constant 0 : index
    %c0_9 = arith.constant 0 : index
    %29 = vector.load %arg3[%c0_7, %c0_8, %c0_9] : memref<1x8x128xf32, #tpu.memory_space<vmem>>, vector<1x8x128xf32>
    %30 = vector.shape_cast %29 : vector<1x8x128xf32> to vector<8x128xf32>
    %31 = vector.shape_cast %28 : vector<8x128xf32> to vector<1x8x128xf32>
    tpu.vector_store %arg3[%c0_7, %c0_8, %c0_9], %31 {strides = array<i32>} : memref<1x8x128xf32, #tpu.memory_space<vmem>>, vector<1x8x128xf32>,
    return
  }
  func.func @transform_0(%arg0: i32, %arg1: i32) -> (i32, i32, i32) {
    %c0_i32 = arith.constant 0 : i32
    %c0_i32_0 = arith.constant 0 : i32
    return %arg0, %c0_i32, %arg1 : i32, i32, i32
  }
  func.func @transform_1(%arg0: i32, %arg1: i32) -> (i32, i32, i32) {
    %c1_i32 = arith.constant 1 : i32
    %0 = arith.muli %arg0, %c1_i32 : i32
    %1 = arith.addi %0, %arg1 : i32
    %c0_i32 = arith.constant 0 : i32
    %c0_i32_0 = arith.constant 0 : i32
    %c0_i32_1 = arith.constant 0 : i32
    return %1, %c0_i32, %c0_i32_0 : i32, i32, i32
  }
}

</mosaic_0001>

<llo_original>
// kernel: tpu_custom_call.1
$region0: #{tpu_custom_call.1}
  #allocation0 [shape = 'u32[]', space=smem, size = 0x4, offset = 0x4, fixed_abs, tag = 'smem constant byte address 0x4 - core index']
  #allocation1 [shape = 'u32[144,128]{1,0:T(1,128)}', space=vmem, size = 0x12000, scoped, tag = 'internal scratch']
  %s0 = inlined_call_operand.hbm [shape: f32[2,4,256], index: 0, kind: input, shape index: {}]
  %s1 = inlined_call_operand.hbm [shape: f32[2,8,128], index: 1, kind: output, shape index: {}]
  %s2 = sld [smem:[#allocation0]]
  $region41: #{tpu_custom_call.1} parent=0
    _
  %s4 = ssub.s32 1, %s2
  %s5 = scalar_select 0, %s4, %s2
  $region1: #{tpu_custom_call.1} parent=0
    #allocation2 [shape = 'u8[8192]{0}', space=vmem, size = 0x2000, scoped, tag = 'input window, operand 0']
    #allocation3 [shape = 's32[2]{0}', space=sflag, size = 0x8, scoped, tag = 'scoped memory for tpu_custom_call.1']
    #allocation4 [shape = 's32[2]{0}', space=sflag, size = 0x8, scoped, tag = 'scoped memory for tpu_custom_call.1']
    #allocation5 [shape = 'u8[8192]{0}', space=vmem, size = 0x2000, scoped, tag = 'output window, operand 0']
    %6 = vsyncpa [#allocation3], 0
    %s7 = scalar_lea.sflag [#allocation3], 1
    %8 = vsyncpa %s7, 0
    %9 = vsyncpa [#allocation4], 0
    %s10 = scalar_lea.sflag [#allocation4], 1
    %11 = vsyncpa %s10, 0
    loop: start=0, step=1, limit=4
    $region2: #{tpu_custom_call.1} parent=1 // loop_pre_header
      _
    $region3: #{tpu_custom_call.1} parent=1 // loop_header
      %s13 = sphi 0, %s17
      %p14 = scmp.ge.s32.totalorder %s13, 4
      %s20 = sphi 0, %s32
      %s21 = sphi 0, %s28
      %s22 = sphi 0, %s20
      %s23 = sphi 0, %s21
      %s24 = sphi 0, %s22
      %s25 = sphi 0, %s23
      %s37 = sphi 0, %s39
      %s40 = sphi 0, %s37
      %s41 = sphi 0, %s40
      %s57 = sphi 0, %s41
      %s65 = sphi 0, %s67
      %s68 = sphi 0, %s65
      %s69 = sphi 0, %s68
      %s85 = sphi 0, %s69
    $region4: #{tpu_custom_call.1} parent=1 // loop_header_branch
      %16 = sbr.rel (%p14) target = $region8
    $region5: #{tpu_custom_call.1} parent=1 // loop_body
      %s18 = ssub.s32 %s13, 1
      %s19 = ssub.s32 %s13, 2
      %s26 = sadd.s32 1, %s21
      %p27 = scmp.ge.s32.totalorder %s26, 1
      %s28 = scalar_select %p27, 0, %s26
      %s29 = sadd.s32 1, %s20
      %s30 = scalar_select %p27, %s29, %s20
      %p31 = scmp.ge.s32.totalorder %s30, 2
      %s32 = scalar_select %p31, 0, %s30
      %s33 = ssub.s32 %s20, %s32
      %s34 = ssub.s32 %s21, %s28
      %s35 = sor.u32 %s33, %s34
      %p36 = scmp.eq.s32.totalorder %s35, 0
      %s38 = sadd.s32 %s37, 1
      %s39 = scalar_select %p36, %s37, %s38
      %p42 = pneg %p36
      %p43 = scmp.eq.s32.totalorder %s13, 1
      %p44 = por %p42, %p43
      %p45 = scmp.ne.s32.totalorder %s37, %s40
      %p46 = scmp.eq.s32.totalorder %s13, 0
      %p47 = por %p45, %p46
      %p48 = scmp.ne.s32.totalorder %s37, %s40
      %p49 = scmp.eq.s32.totalorder %s18, 1
      %p50 = por %p48, %p49
      %p51 = scmp.ne.s32.totalorder %s40, %s41
      %p52 = scmp.eq.s32.totalorder %s18, 0
      %p53 = por %p51, %p52
      %p54 = scmp.ne.s32.totalorder %s40, %s41
      %p55 = scmp.eq.s32.totalorder %s19, 1
      %p56 = por %p54, %p55
      %p58 = scmp.ne.s32.totalorder %s41, %s57
      %p59 = scmp.eq.s32.totalorder %s19, 0
      %p60 = por %p58, %p59
      %s61 = sadd.s32 %s20, %s21
      %s62 = sadd.s32 %s32, %s28
      %s63 = ssub.s32 %s61, %s62
      %p64 = scmp.eq.s32.totalorder %s63, 0
      %s66 = sadd.s32 %s65, 1
      %s67 = scalar_select %p64, %s65, %s66
      %p70 = pneg %p64
      %p71 = scmp.eq.s32.totalorder %s13, 1
      %p72 = por %p70, %p71
      %p73 = scmp.ne.s32.totalorder %s65, %s68
      %p74 = scmp.eq.s32.totalorder %s13, 0
      %p75 = por %p73, %p74
      %p76 = scmp.ne.s32.totalorder %s65, %s68
      %p77 = scmp.eq.s32.totalorder %s18, 1
      %p78 = por %p76, %p77
      %p79 = scmp.ne.s32.totalorder %s68, %s69
      %p80 = scmp.eq.s32.totalorder %s18, 0
      %p81 = por %p79, %p80
      %p82 = scmp.ne.s32.totalorder %s68, %s69
      %p83 = scmp.eq.s32.totalorder %s19, 1
      %p84 = por %p82, %p83
      %p86 = scmp.ne.s32.totalorder %s69, %s85
      %p87 = scmp.eq.s32.totalorder %s19, 0
      %p88 = por %p86, %p87
      %p89 = scmp.le.s32.totalorder 1, %s13
      %p90 = scmp.lt.s32.totalorder %s13, 3
      %p91 = pnand %p89, %p90
      %p92 = pneg %p91
      // Predicated region
      $region9: #{tpu_custom_call.1} parent=5 // pred_check
        _
      $region10: #{tpu_custom_call.1} parent=5 // pred_check_branch
        %94 = sbr.rel (%p91) target = $region12
      $region11: #{tpu_custom_call.1} parent=5 // pred_region
        %s95 = ssub.s32 %s13, 1
      $region12: #{tpu_custom_call.1} parent=5 // pred_fallthru
        _
      %p96 = scmp.lt.s32.totalorder %s13, 2
      // Predicated region
      $region13: #{tpu_custom_call.1} parent=5 // pred_check
        %p97 = pneg %p96
      $region14: #{tpu_custom_call.1} parent=5 // pred_check_branch
        %99 = sbr.rel (%p97) target = $region16
      $region15: #{tpu_custom_call.1} parent=5 // pred_region
        // Predicated region
        $region17: #{tpu_custom_call.1} parent=15 // pred_check
          %p100 = pneg %p47
        $region18: #{tpu_custom_call.1} parent=15 // pred_check_branch
          %102 = sbr.rel (%p100) target = $region20
        $region19: #{tpu_custom_call.1} parent=15 // pred_region
          %s103 = sand.u32 %s37, 1
          %s104 = scalar_lea.sflag [#allocation3], %s103
          %s105 = sand.u32 %s37, 1
          %s106 = smul.addr %s105, 8
          %s107 = scalar_lea.vmem [#allocation2], %s106
          %s108 = smul.u32 2, %s21
          %s110 = ssub.s32 128, 128
          %111 = vsyncadd %s104, %s110
          %s112 = smul.addr %s20, 2
          %s113 = sadd.s32 %s108, %s112
          %s114 = smul.addr %s113, 64
          %s115 = scalar_lea.hbm %s0, %s114
          %s117 = sshll.u32 %s107, 4
          %s118 = int_to_ptr.vmem [resolvable:$true] %s117
          %120 = dma.hbm_to_vmem [thread:$0]  %s115, 128, %s118, %s104
        $region20: #{tpu_custom_call.1} parent=15 // pred_fallthru
          _
      $region16: #{tpu_custom_call.1} parent=5 // pred_fallthru
        _
      %p121 = scmp.le.s32.totalorder 1, %s13
      %p122 = scmp.lt.s32.totalorder %s13, 3
      %p123 = pnand %p121, %p122
      %p124 = pneg %p123
      // Predicated region
      $region21: #{tpu_custom_call.1} parent=5 // pred_check
        _
      $region22: #{tpu_custom_call.1} parent=5 // pred_check_branch
        %126 = sbr.rel (%p123) target = $region24
      $region23: #{tpu_custom_call.1} parent=5 // pred_region
        %s127 = ssub.s32 %s13, 1
        %s128 = sand.u32 %s40, 1
        %s129 = scalar_lea.sflag [#allocation3], %s128
        %s130 = sand.u32 %s40, 1
        %s131 = smul.addr %s130, 8
        %s132 = scalar_lea.vmem [#allocation2], %s131
        // Predicated region
        $region25: #{tpu_custom_call.1} parent=23 // pred_check
          %p133 = pneg %p53
        $region26: #{tpu_custom_call.1} parent=23 // pred_check_branch
          %135 = sbr.rel (%p133) target = $region28
        $region27: #{tpu_custom_call.1} parent=23 // pred_region
          %136 = dma.done %s129, 128
        $region28: #{tpu_custom_call.1} parent=23 // pred_fallthru
          _
        %s137 = sand.u32 %s40, 1
        %s138 = scalar_lea.sflag [#allocation3], %s137
        %s139 = sand.u32 %s40, 1
        %s140 = smul.addr %s139, 8
        %s141 = scalar_lea.vmem [#allocation2], %s140
        %p142 = pneg %p53
        %p143 = pneg %p50
        %p144 = pneg %p81
        %p145 = pneg %p78
        %s146 = sand.u32 %s68, 1
        %s147 = scalar_lea.sflag [#allocation4], %s146
        %s148 = sand.u32 %s68, 1
        %s149 = smul.addr %s148, 8
        %s150 = scalar_lea.vmem [#allocation5], %s149
        %s151 = smul.u32 2, %s23
        %s152 = sadd.s32 %s22, %s23
        %v153 = vld [vmem:[%s132] sm:$0xff]
        %v155 = vcombine.high %v153, %v153
        %vm157 = vcmask 1043456
        %v158 = vsel %vm157, %v153, -inf
        %v159 = vrot.slane %v158, 4
        %v160 = vmax.f32 %v158, %v159
        %v161 = vrot.slane %v160, 2
        %v162 = vmax.f32 %v160, %v161
        %v163 = vrot.slane %v162, 1
        %v164 = vmax.f32 %v162, %v163
        %v165 = vsel %vm157, %v155, -inf
        %v166 = vrot.slane %v165, 4
        %v167 = vmax.f32 %v165, %v166
        %v168 = vrot.slane %v167, 2
        %v169 = vmax.f32 %v167, %v168
        %v170 = vrot.slane %v169, 1
        %v171 = vmax.f32 %v169, %v170
        %v174 = vcombine.low %v164, %v171
        %v176 = vsub.f32 %v153, %v174
        %v177 = vmul.f32 %v176, 1.442695
        %v178 = vpow.pop %v177
        %v180 = vcombine.high %v178, %v178
        %v182 = vsel %vm157, %v178, 0.0
        %v183 = vrot.slane %v182, 4
        %v184 = vadd.f32 %v182, %v183
        %v185 = vrot.slane %v184, 2
        %v186 = vadd.f32 %v184, %v185
        %v187 = vrot.slane %v186, 1
        %v188 = vadd.f32 %v186, %v187
        %v189 = vsel %vm157, %v180, 0.0
        %v190 = vrot.slane %v189, 4
        %v191 = vadd.f32 %v189, %v190
        %v192 = vrot.slane %v191, 2
        %v193 = vadd.f32 %v191, %v192
        %v194 = vrot.slane %v193, 1
        %v195 = vadd.f32 %v193, %v194
        %v196 = vmul.f32 %v178, %v176
        %v198 = vcombine.high %v196, %v196
        %v200 = vsel %vm157, %v196, 0.0
        %v201 = vrot.slane %v200, 4
        %v202 = vadd.f32 %v200, %v201
        %v203 = vrot.slane %v202, 2
        %v204 = vadd.f32 %v202, %v203
        %v205 = vrot.slane %v204, 1
        %v206 = vadd.f32 %v204, %v205
        %v207 = vsel %vm157, %v198, 0.0
        %v208 = vrot.slane %v207, 4
        %v209 = vadd.f32 %v207, %v208
        %v210 = vrot.slane %v209, 2
        %v211 = vadd.f32 %v209, %v210
        %v212 = vrot.slane %v211, 1
        %v213 = vadd.f32 %v211, %v212
        %v214 = vlog2.pop %v188
        %v215 = vmul.f32 %v214, 0.6931472
        %v216 = vlog2.pop %v195
        %v217 = vmul.f32 %v216, 0.6931472
        %v218 = vrcp.pop %v188
        %v219 = vmul.f32 %v206, %v218
        %v220 = vrcp.pop %v195
        %v221 = vmul.f32 %v213, %v220
        %v222 = vsub.f32 %v215, %v219
        %v223 = vsub.f32 %v217, %v221
        %vm224 = vcmask 1040384
        %v225 = vsel %vm224, %v222, 0.0
        %v226 = vsel %vm224, %v223, 0.0
        %v227 = vadd.f32 %v225, %v226
        %228 = vadd.xlane.f32.xlu0 %v227
        %v229 = vpop.xlane.xlu0 %228
        %v230 = vrot.slane %v229, 4
        %v231 = vadd.f32 %v229, %v230
        %v232 = vrot.slane %v231, 2
        %v233 = vadd.f32 %v231, %v232
        %v234 = vrot.slane %v233, 1
        %v235 = vadd.f32 %v233, %v234
        %s236 = vtos %v235
        %v237 = vlaneseq
        %v238 = vshrl.u32 %v237, 7
        %v239 = vlaneseq
        %v240 = vand.u32 %v239, 127
        %vm241 = vcmp.eq.s32.totalorder %v238, 0
        %vm242 = vcmp.eq.s32.totalorder %v240, 0
        %vm243 = vmand %vm241, %vm242
        %v244 = vstv %s236
        %v245 = vsel %vm243, %v244, 0.0
        %246 = vst [vmem:[%s150] sm:$0xff] %v245
        %s247 = sand.u32 %s68, 1
        %s248 = scalar_lea.sflag [#allocation4], %s247
        %s249 = sand.u32 %s68, 1
        %s250 = smul.addr %s249, 8
        %s251 = scalar_lea.vmem [#allocation5], %s250
        // Predicated region
        $region29: #{tpu_custom_call.1} parent=23 // pred_check
          %p252 = pneg %p78
        $region30: #{tpu_custom_call.1} parent=23 // pred_check_branch
          %254 = sbr.rel (%p252) target = $region32
        $region31: #{tpu_custom_call.1} parent=23 // pred_region
          %s255 = sadd.s32 %s22, %s23
          %s257 = ssub.s32 128, 128
          %258 = vsyncadd %s248, %s257
          %s259 = smul.addr %s255, 128
          %s260 = scalar_lea.hbm %s1, %s259
          %s262 = sshll.u32 %s251, 4
          %s263 = int_to_ptr.vmem [resolvable:$true] %s262
          %265 = dma.vmem_to_hbm [thread:$0]  %s263, 128, %s260, %s248
        $region32: #{tpu_custom_call.1} parent=23 // pred_fallthru
          _
      $region24: #{tpu_custom_call.1} parent=5 // pred_fallthru
        _
      %p266 = scmp.le.s32.totalorder 2, %s13
      // Predicated region
      $region33: #{tpu_custom_call.1} parent=5 // pred_check
        %p267 = pneg %p266
      $region34: #{tpu_custom_call.1} parent=5 // pred_check_branch
        %269 = sbr.rel (%p267) target = $region36
      $region35: #{tpu_custom_call.1} parent=5 // pred_region
        %s270 = ssub.s32 %s13, 2
        // Predicated region
        $region37: #{tpu_custom_call.1} parent=35 // pred_check
          %p271 = pneg %p84
        $region38: #{tpu_custom_call.1} parent=35 // pred_check_branch
          %273 = sbr.rel (%p271) target = $region40
        $region39: #{tpu_custom_call.1} parent=35 // pred_region
          %s274 = sand.u32 %s69, 1
          %s275 = scalar_lea.sflag [#allocation4], %s274
          %s276 = sand.u32 %s69, 1
          %s277 = smul.addr %s276, 8
          %s278 = scalar_lea.vmem [#allocation5], %s277
          %279 = dma.done %s275, 128
        $region40: #{tpu_custom_call.1} parent=35 // pred_fallthru
          _
      $region36: #{tpu_custom_call.1} parent=5 // pred_fallthru
        _
    $region6: #{tpu_custom_call.1} parent=1 // loop_footer
      %s17 = sadd.s32 1, %s13
    $region7: #{tpu_custom_call.1} parent=1 // loop_footer_branch
      %12 = sbr.rel target = $region3
    $region8: #{tpu_custom_call.1} parent=1 // loop_exit
      _
    %280 = vsyncpa [#allocation3], 1
    %s281 = scalar_lea.sflag [#allocation3], 1
    %282 = vsyncpa %s281, 1
    %283 = vsyncpa [#allocation4], 1
    %s284 = scalar_lea.sflag [#allocation4], 1
    %285 = vsyncpa %s284, 1

</llo_original>
